<compile_context>
chip_gen: v7x
topology: tpu7x:2x2x1
jax: 0.10.0
libtpu: 0.0.40
codegen_flags: <defaults>
</compile_context>

<pallas_src>
import jax
import jax.numpy as jnp
from jax import lax
from jax.experimental import pallas as pl
from jax.experimental.pallas import tpu as pltpu


def _frozen_bn_kernel(x_ref, s_ref, b_ref, o_ref):
    """Elementwise hot path: y = x * scale + bias (per-row scale/bias)."""
    x = x_ref[...].astype(jnp.float32)            # (tr, tl) in f32
    y = x * s_ref[...] + b_ref[...]               # (tr, 1) broadcast over lanes
    o_ref[...] = y.astype(o_ref.dtype)


def _choose_tiles(R, L, itemsize):
    """Pick (row_tile, lane_tile) targeting ~4 MiB of x per tile."""
    # Packed-sublane granularity: 16 rows/vreg for 16-bit dtypes, 8 for f32.
    sub = 8 if itemsize >= 4 else 16
    # Lane tile: full extent when modest (always a legal block shape), else a
    # large lane-dense multiple of 128 so output stores are unmasked vst and
    # the VMEM footprint is decoupled from image size.
    tl = L if L <= 4096 else 2048
    # Row tile: fill ~4 MiB per x tile.  With double buffering of input and
    # output that is ~16 MiB live, well inside the explicit VMEM budget below
    # on v5e/v6e (128 MiB physical) and v7x (64 MiB physical).
    target_bytes = 4 * 1024 * 1024
    tr = max(1, target_bytes // max(1, tl * itemsize))
    if tr >= R:
        tr = R                                    # full extent (always legal)
    else:
        tr = max(sub, (tr // sub) * sub)          # multiple of sublane pack
        tr = min(tr, R)
    return tr, tl


def frozen_batch_norm_2d(x, weight, bias, running_mean, running_var,
                         eps: float = 1e-05):
    """x: (N, C, H, W); params: (C,). Returns (N, C, H, W) in x.dtype."""
    N, C, H, W = x.shape
    R = N * C
    L = H * W

    x2 = x.reshape(R, L)                          # contiguous view, free

    # Precompute per-channel scale/bias (cheap C-length ops) and replicate
    # across the batch so each row of x2 (one (n, c) pair) has its own scalar.
    w = weight.astype(jnp.float32)
    b = bias.astype(jnp.float32)
    rm = running_mean.astype(jnp.float32)
    rv = running_var.astype(jnp.float32)
    scale_c = w * lax.rsqrt(rv + eps)             # (C,)
    bias_c = b - rm * scale_c                     # (C,)
    scale2 = jnp.broadcast_to(scale_c[None, :], (N, C)).reshape(R, 1)
    bias2 = jnp.broadcast_to(bias_c[None, :], (N, C)).reshape(R, 1)

    itemsize = jnp.dtype(x.dtype).itemsize
    tr, tl = _choose_tiles(R, L, itemsize)
    grid = (pl.cdiv(R, tr), pl.cdiv(L, tl))

    x_spec = pl.BlockSpec((tr, tl), lambda i, j: (i, j))
    # Params are indexed only by the row axis -> their tiles are re-DMA'd only
    # when the row block changes (the lane axis is the inner grid dim).
    p_spec = pl.BlockSpec((tr, 1), lambda i, j: (i, 0))

    out2 = pl.pallas_call(
        _frozen_bn_kernel,
        out_shape=jax.ShapeDtypeStruct((R, L), x.dtype),
        grid=grid,
        in_specs=[x_spec, p_spec, p_spec],
        out_specs=x_spec,
        compiler_params=pltpu.CompilerParams(
            dimension_semantics=("parallel", "parallel"),
            # ~17 MiB actually live; raise the scoped limit for headroom
            # (still far below physical VMEM on v5e/v6e/v7x).
            vmem_limit_bytes=48 * 1024 * 1024,
        ),
    )(x2, scale2, bias2)

    return out2.reshape(N, C, H, W)


def _reference(x, weight, bias, running_mean, running_var):
    """Pure-JAX reference mirroring the PyTorch forward exactly."""
    w = weight.reshape(1, -1, 1, 1)
    b = bias.reshape(1, -1, 1, 1)
    rv = running_var.reshape(1, -1, 1, 1)
    rm = running_mean.reshape(1, -1, 1, 1)
    eps = 1e-05
    scale = w * lax.rsqrt(rv + eps)
    bias_ = b - rm * scale
    return x * scale + bias_


if __name__ == "__main__":
    key = jax.random.PRNGKey(0)
    k_x, k_w, k_b, k_m, k_v = jax.random.split(key, 5)

    N, C, H, W = 2, 4, 16, 16
    x = jax.random.normal(k_x, (N, C, H, W), dtype=jnp.float32)

    # FrozenBatchNorm2d buffers are shape (C,); use non-trivial deterministic
    # values so the normalization actually does something.
    weight = 1.0 + 0.1 * jax.random.normal(k_w, (C,), dtype=jnp.float32)
    bias = 0.1 * jax.random.normal(k_b, (C,), dtype=jnp.float32)
    running_mean = 0.5 * jax.random.normal(k_m, (C,), dtype=jnp.float32)
    running_var = jnp.abs(1.0 + 0.2 * jax.random.normal(k_v, (C,), dtype=jnp.float32))

    # f32 path
    out = frozen_batch_norm_2d(x, weight, bias, running_mean, running_var)
    out = jax.block_until_ready(out)
    ref = _reference(x, weight, bias, running_mean, running_var)
    assert out.shape == (N, C, H, W)
    assert out.dtype == x.dtype
    assert jnp.allclose(out, ref, atol=1e-5, rtol=1e-5)

    # bf16 path (exercises the in-kernel upcast + explicit downcast on store)
    x_bf16 = x.astype(jnp.bfloat16)
    out_bf16 = frozen_batch_norm_2d(x_bf16, weight, bias,
                                    running_mean, running_var)
    out_bf16 = jax.block_until_ready(out_bf16)
    ref_bf16 = _reference(x_bf16.astype(jnp.float32), weight, bias,
                          running_mean, running_var)
    assert out_bf16.dtype == jnp.bfloat16
    assert jnp.allclose(out_bf16.astype(jnp.float32), ref_bf16,
                        atol=3e-2, rtol=3e-2)

    print("KERNEL_OK")
</pallas_src>

<mosaic_0001>
module attributes {stable_mosaic.version = 11 : i64} {
  func.func @_frozen_bn_kernel(%arg0: i32, %arg1: i32, %arg2: memref<8x256xf32, #tpu.memory_space<vmem>>, %arg3: memref<8x1xf32, #tpu.memory_space<vmem>>, %arg4: memref<8x1xf32, #tpu.memory_space<vmem>>, %arg5: memref<8x256xf32, #tpu.memory_space<vmem>>) attributes {dimension_semantics = [#tpu.dimension_semantics<parallel>, #tpu.dimension_semantics<parallel>], iteration_bounds = array<i64: 1, 1>, scalar_prefetch = 0 : i64, scratch_operands = 0 : i64, tpu.core_type = #tpu.core_type<tc>, window_params = [{transform_indices = @transform_0, window_bounds = array<i64: 8, 256>}, {transform_indices = @transform_1, window_bounds = array<i64: 8, 1>}, {transform_indices = @transform_2, window_bounds = array<i64: 8, 1>}, {transform_indices = @transform_3, window_bounds = array<i64: 8, 256>}]} {
    %c0 = arith.constant 0 : index
    %c0_0 = arith.constant 0 : index
    %0 = vector.load %arg2[%c0, %c0_0] : memref<8x256xf32, #tpu.memory_space<vmem>>, vector<8x256xf32>
    %c0_1 = arith.constant 0 : index
    %c0_2 = arith.constant 0 : index
    %1 = vector.load %arg3[%c0_1, %c0_2] : memref<8x1xf32, #tpu.memory_space<vmem>>, vector<8x1xf32>
    %2 = vector.broadcast %1 : vector<8x1xf32> to vector<8x256xf32>
    %3 = arith.mulf %0, %2 : vector<8x256xf32>
    %c0_3 = arith.constant 0 : index
    %c0_4 = arith.constant 0 : index
    %4 = vector.load %arg4[%c0_3, %c0_4] : memref<8x1xf32, #tpu.memory_space<vmem>>, vector<8x1xf32>
    %5 = vector.broadcast %4 : vector<8x1xf32> to vector<8x256xf32>
    %6 = arith.addf %3, %5 : vector<8x256xf32>
    %c0_5 = arith.constant 0 : index
    %c0_6 = arith.constant 0 : index
    %7 = vector.load %arg5[%c0_5, %c0_6] : memref<8x256xf32, #tpu.memory_space<vmem>>, vector<8x256xf32>
    tpu.vector_store %arg5[%c0_5, %c0_6], %6 {strides = array<i32>} : memref<8x256xf32, #tpu.memory_space<vmem>>, vector<8x256xf32>,
    return
  }
  func.func @transform_0(%arg0: i32, %arg1: i32) -> (i32, i32) {
    %c0_i32 = arith.constant 0 : i32
    return %arg0, %arg1 : i32, i32
  }
  func.func @transform_1(%arg0: i32, %arg1: i32) -> (i32, i32) {
    %c0_i32 = arith.constant 0 : i32
    %c0_i32_0 = arith.constant 0 : i32
    return %arg0, %c0_i32 : i32, i32
  }
  func.func @transform_2(%arg0: i32, %arg1: i32) -> (i32, i32) {
    %c0_i32 = arith.constant 0 : i32
    %c0_i32_0 = arith.constant 0 : i32
    return %arg0, %c0_i32 : i32, i32
  }
  func.func @transform_3(%arg0: i32, %arg1: i32) -> (i32, i32) {
    %c0_i32 = arith.constant 0 : i32
    return %arg0, %arg1 : i32, i32
  }
}

</mosaic_0001>

<llo_original>
// kernel: tpu_custom_call.1
$region0: #{tpu_custom_call.1}
  #allocation0 [shape = 'u32[]', space=smem, size = 0x4, offset = 0x4, fixed_abs, tag = 'smem constant byte address 0x4 - core index']
  #allocation1 [shape = 'u32[144,128]{1,0:T(1,128)}', space=vmem, size = 0x12000, scoped, tag = 'internal scratch']
  %s0 = inlined_call_operand.vmem [shape: f32[8,256], index: 0, kind: input, shape index: {}]
  %s1 = inlined_call_operand.vmem [shape: f32[8,1], index: 1, kind: input, shape index: {}]
  %s2 = inlined_call_operand.vmem [shape: f32[8,1], index: 2, kind: input, shape index: {}]
  %s3 = inlined_call_operand.hbm [shape: f32[8,256], index: 3, kind: output, shape index: {}]
  %s4 = sld [smem:[#allocation0]]
  $region22: #{tpu_custom_call.1} parent=0
    _
  %s6 = ssub.s32 1, %s4
  %s7 = scalar_select 0, %s6, %s4
  $region1: #{tpu_custom_call.1} parent=0
    #allocation2 [shape = 'u8[8192]{0}', space=vmem, size = 0x2000, scoped, tag = 'output window, operand 0, single buffered']
    #allocation3 [shape = 's32[1]{0}', space=sflag, size = 0x4, scoped, tag = 'scoped memory for tpu_custom_call.1']
    %8 = vsyncpa [#allocation3], 0
    // Predicated region
    $region2: #{tpu_custom_call.1} parent=1 // pred_check
      _
    $region3: #{tpu_custom_call.1} parent=1 // pred_check_branch
      %10 = sbr.rel (0) target = $region5
    $region4: #{tpu_custom_call.1} parent=1 // pred_region
      _
    $region5: #{tpu_custom_call.1} parent=1 // pred_fallthru
      _
    // Predicated region
    $region6: #{tpu_custom_call.1} parent=1 // pred_check
      _
    $region7: #{tpu_custom_call.1} parent=1 // pred_check_branch
      %12 = sbr.rel (0) target = $region9
    $region8: #{tpu_custom_call.1} parent=1 // pred_region
      _
    $region9: #{tpu_custom_call.1} parent=1 // pred_fallthru
      _
    // Predicated region
    $region10: #{tpu_custom_call.1} parent=1 // pred_check
      _
    $region11: #{tpu_custom_call.1} parent=1 // pred_check_branch
      %14 = sbr.rel (0) target = $region13
    $region12: #{tpu_custom_call.1} parent=1 // pred_region
      _
    $region13: #{tpu_custom_call.1} parent=1 // pred_fallthru
      _
    %v15 = vld [vmem:[%s0] sm:$0xff]
    %v16 = vld [vmem:[%s0 + $0x8] sm:$0xff]
    %v17 = vld [vmem:[%s1] sm:$0xff]
    %19 = vset.pattern.permute.xlu0 0
    %20 = vperm.xlu0 %19, %v17
    %v21 = vpop.permute.xlu0 %20
    %v23 = vmul.f32 %v15, %v21
    %v24 = vmul.f32 %v16, %v21
    %v25 = vld [vmem:[%s2] sm:$0xff]
    %27 = vset.pattern.permute.xlu0 0
    %28 = vperm.xlu0 %27, %v25
    %v29 = vpop.permute.xlu0 %28
    %v31 = vadd.f32 %v23, %v29
    %v32 = vadd.f32 %v24, %v29
    %33 = vst [vmem:[#allocation2] sm:$0xff] %v31
    %34 = vst [vmem:[#allocation2 + $0x8] sm:$0xff] %v32
    // Predicated region
    $region14: #{tpu_custom_call.1} parent=1 // pred_check
      _
    $region15: #{tpu_custom_call.1} parent=1 // pred_check_branch
      %36 = sbr.rel (0) target = $region17
    $region16: #{tpu_custom_call.1} parent=1 // pred_region
      %s38 = ssub.s32 256, 256
      %39 = vsyncadd [#allocation3], %s38
      %s41 = sshll.u32 [#allocation2], 4
      %s42 = int_to_ptr.vmem [resolvable:$true] %s41
      %44 = dma.vmem_to_hbm [thread:$0]  %s42, 256, %s3, [#allocation3]
    $region17: #{tpu_custom_call.1} parent=1 // pred_fallthru
      _
    // Predicated region
    $region18: #{tpu_custom_call.1} parent=1 // pred_check
      _
    $region19: #{tpu_custom_call.1} parent=1 // pred_check_branch
      %46 = sbr.rel (0) target = $region21
    $region20: #{tpu_custom_call.1} parent=1 // pred_region
      %47 = dma.done [#allocation3], 256
    $region21: #{tpu_custom_call.1} parent=1 // pred_fallthru
      _
    %48 = vsyncpa [#allocation3], 1

</llo_original>
